<compile_context>
chip_gen: v7x
topology: tpu7x:2x2x1
jax: 0.10.0
libtpu: 0.0.40
codegen_flags: <defaults>
</compile_context>

<pallas_src>
import jax
import jax.numpy as jnp
from jax.experimental import pallas as pl
from jax.experimental.pallas import tpu as pltpu


def _masked_ce_kernel(logits_ref, targets_ref, w_ref,
                      num_out_ref, den_out_ref,
                      num_acc, den_acc):
    i = pl.program_id(1)

    # Initialize the per-chunk accumulators on the first tile of this chunk.
    @pl.when(i == 0)
    def _():
        num_acc[...] = jnp.zeros_like(num_acc)
        den_acc[...] = jnp.zeros_like(den_acc)

    x = logits_ref[...].astype(jnp.float32)      # (TM, S)
    t = targets_ref[...].astype(jnp.float32)     # (TM, S)
    w = w_ref[...].astype(jnp.float32)           # (TM, 1) == (1 - mask)

    # Numerically stable soft-target cross entropy:
    #   -sum_s t*(x - max - lse) = sum(t)*lse - sum(t*(x - max))
    row_max = jnp.max(x, axis=-1, keepdims=True)       # XLU (only lane-reduce kept)
    shifted = x - row_max                               # VPU
    e = jnp.exp(shifted)                                # EUP

    ones_s = jnp.ones((x.shape[-1], 1), dtype=jnp.float32)
    sum_exp = jnp.dot(e, ones_s, preferred_element_type=jnp.float32)           # MXU
    sum_t = jnp.dot(t, ones_s, preferred_element_type=jnp.float32)             # MXU
    sum_tx = jnp.dot(t * shifted, ones_s, preferred_element_type=jnp.float32)  # MXU

    lse = jnp.log(sum_exp)                               # (TM, 1)
    row_loss = sum_t * lse - sum_tx                      # (TM, 1)

    # Vector accumulators; reduce to a scalar only once, in the finalize step.
    num_acc[...] += row_loss * w
    den_acc[...] += w

    # Finalize this chunk: broadcast the two scalars into lane-dense (8,128) blocks.
    @pl.when(i == pl.num_programs(1) - 1)
    def _():
        num_out_ref[...] = jnp.zeros_like(num_out_ref) + jnp.sum(num_acc[...])
        den_out_ref[...] = jnp.zeros_like(den_out_ref) + jnp.sum(den_acc[...])


def _round_up(x, mult):
    return ((x + mult - 1) // mult) * mult


def masked_step_modeling_loss(pred_step_logits, step_targets, mask, *,
                              tm=512, num_partials=2):
    """pred_step_logits: (b, m, s) logits (f32 or bf16 -- streamed as-is)
    step_targets:      (b, m, s) soft-label probabilities
    mask:              (b, m); 0 = masked, 1 = unmasked
    Returns the mean cross entropy over masked positions (mask == 0).
    Precondition (same as the PyTorch module): at least one masked position,
    otherwise the result is NaN (0/0)."""
    b, m, s = pred_step_logits.shape
    n = b * m

    # Sublane packing of the streamed dtype (f32 -> 8 rows/vreg, bf16 -> 16).
    itemsize = jnp.dtype(pred_step_logits.dtype).itemsize
    sub = 8 * max(1, 4 // itemsize)

    # Rows per chunk on the leading parallel axis; clamp the row tile so tiny
    # inputs aren't padded up to a full 512-row tile.
    rows_per_partial = _round_up(pl.cdiv(n, num_partials), sub)
    tm = max(sub, min(_round_up(tm, sub), rows_per_partial))
    rows_per_partial = _round_up(rows_per_partial, tm)
    tiles_per_partial = rows_per_partial // tm
    n_pad = rows_per_partial * num_partials

    logits2d = pred_step_logits.reshape(n, s)
    targets2d = step_targets.reshape(n, s)
    weights = (1.0 - mask.astype(jnp.float32)).reshape(n, 1)
    if n_pad != n:
        pad = n_pad - n
        # Padded rows get zero weight (and zero targets), so they contribute 0.
        logits2d = jnp.pad(logits2d, ((0, pad), (0, 0)))
        targets2d = jnp.pad(targets2d, ((0, pad), (0, 0)))
        weights = jnp.pad(weights, ((0, pad), (0, 0)))

    row_block = lambda c, i: (c * tiles_per_partial + i, 0)

    num_out, den_out = pl.pallas_call(
        _masked_ce_kernel,
        out_shape=(
            jax.ShapeDtypeStruct((num_partials * 8, 128), jnp.float32),
            jax.ShapeDtypeStruct((num_partials * 8, 128), jnp.float32),
        ),
        grid_spec=pltpu.PrefetchScalarGridSpec(
            num_scalar_prefetch=0,
            grid=(num_partials, tiles_per_partial),
            in_specs=[
                pl.BlockSpec((tm, s), row_block),
                pl.BlockSpec((tm, s), row_block),
                pl.BlockSpec((tm, 1), row_block),
            ],
            out_specs=[
                pl.BlockSpec((8, 128), lambda c, i: (c, 0)),
                pl.BlockSpec((8, 128), lambda c, i: (c, 0)),
            ],
            scratch_shapes=[
                pltpu.VMEM((tm, 1), jnp.float32),   # per-row numerator accumulator
                pltpu.VMEM((tm, 1), jnp.float32),   # per-row denominator accumulator
            ],
        ),
        compiler_params=pltpu.CompilerParams(
            dimension_semantics=("parallel", "arbitrary"),
        ),
    )(logits2d, targets2d, weights)

    # Each chunk's (8,128) output block is a broadcast of its scalar; take one
    # element per chunk, sum partials, divide once here.
    num = jnp.sum(num_out.reshape(num_partials, 8, 128)[:, 0, 0])
    den = jnp.sum(den_out.reshape(num_partials, 8, 128)[:, 0, 0])
    return num / den


def _reference_loss(pred_step_logits, step_targets, mask):
    b, m, s = pred_step_logits.shape
    x = pred_step_logits.reshape(b * m, s).astype(jnp.float32)
    t = step_targets.reshape(b * m, s).astype(jnp.float32)
    w = (1.0 - mask.astype(jnp.float32)).reshape(b * m)
    logp = jax.nn.log_softmax(x, axis=-1)
    loss = -jnp.sum(t * logp, axis=-1)
    return jnp.sum(loss * w) / jnp.sum(w)


if __name__ == "__main__":
    key = jax.random.PRNGKey(0)
    b, m, s = 2, 8, 128
    mask_ratio = 0.5

    k1, k2, k3 = jax.random.split(key, 3)
    pred_step_logits = jax.random.normal(k1, (b, m, s), dtype=jnp.float32)
    # Soft pseudo-label targets: probabilities over s steps.
    step_targets = jax.nn.softmax(jax.random.normal(k2, (b, m, s), dtype=jnp.float32), axis=-1)
    # Deterministic Bernoulli(mask_ratio) sampling; 0 = masked, 1 = unmasked.
    # TODO(synk): generate_mask's torch.bernoulli retry loop is host-side RNG,
    # not part of the forward pass; the mask is an input here.
    bern = (jax.random.uniform(k3, (b, m)) < mask_ratio).astype(jnp.float32)
    mask = 1.0 - bern
    # Guarantee at least one masked position (mirrors the retry loop).
    mask = mask.at[0, 0].set(0.0)

    loss = masked_step_modeling_loss(pred_step_logits, step_targets, mask)
    loss = jax.block_until_ready(loss)

    ref = _reference_loss(pred_step_logits, step_targets, mask)
    assert jnp.allclose(loss, ref, rtol=1e-5, atol=1e-5), (loss, ref)
    print("KERNEL_OK")
</pallas_src>

<mosaic_0001>
module attributes {stable_mosaic.version = 11 : i64} {
  func.func @_masked_ce_kernel(%arg0: i32, %arg1: i32, %arg2: memref<8x128xf32, #tpu.memory_space<vmem>>, %arg3: memref<8x128xf32, #tpu.memory_space<vmem>>, %arg4: memref<8x1xf32, #tpu.memory_space<vmem>>, %arg5: memref<8x128xf32, #tpu.memory_space<vmem>>, %arg6: memref<8x128xf32, #tpu.memory_space<vmem>>, %arg7: memref<8x1xf32, #tpu.memory_space<vmem>>, %arg8: memref<8x1xf32, #tpu.memory_space<vmem>>) attributes {dimension_semantics = [#tpu.dimension_semantics<parallel>, #tpu.dimension_semantics<arbitrary>], iteration_bounds = array<i64: 2, 1>, scalar_prefetch = 0 : i64, scratch_operands = 2 : i64, tpu.core_type = #tpu.core_type<tc>, window_params = [{transform_indices = @transform_0, window_bounds = array<i64: 8, 128>}, {transform_indices = @transform_1, window_bounds = array<i64: 8, 128>}, {transform_indices = @transform_2, window_bounds = array<i64: 8, 1>}, {transform_indices = @transform_3, window_bounds = array<i64: 8, 128>}, {transform_indices = @transform_4, window_bounds = array<i64: 8, 128>}]} {
    %c0_i32 = arith.constant 0 : i32
    %0 = arith.cmpi eq, %arg1, %c0_i32 : i32
    %1 = arith.extui %0 : i1 to i32
    %c0_i32_0 = arith.constant 0 : i32
    %2 = arith.cmpi ne, %1, %c0_i32_0 : i32
    scf.if %2 {
      %cst_20 = arith.constant 0.000000e+00 : f32
      %29 = vector.broadcast %cst_20 : f32 to vector<8x1xf32>
      %c0_21 = arith.constant 0 : index
      %c0_22 = arith.constant 0 : index
      %30 = vector.load %arg7[%c0_21, %c0_22] : memref<8x1xf32, #tpu.memory_space<vmem>>, vector<8x1xf32>
      tpu.vector_store %arg7[%c0_21, %c0_22], %29 {strides = array<i32>} : memref<8x1xf32, #tpu.memory_space<vmem>>, vector<8x1xf32>,
      %cst_23 = arith.constant 0.000000e+00 : f32
      %31 = vector.broadcast %cst_23 : f32 to vector<8x1xf32>
      %c0_24 = arith.constant 0 : index
      %c0_25 = arith.constant 0 : index
      %32 = vector.load %arg8[%c0_24, %c0_25] : memref<8x1xf32, #tpu.memory_space<vmem>>, vector<8x1xf32>
      tpu.vector_store %arg8[%c0_24, %c0_25], %31 {strides = array<i32>} : memref<8x1xf32, #tpu.memory_space<vmem>>, vector<8x1xf32>,
    } else {
    }
    %c0 = arith.constant 0 : index
    %c0_1 = arith.constant 0 : index
    %3 = vector.load %arg2[%c0, %c0_1] : memref<8x128xf32, #tpu.memory_space<vmem>>, vector<8x128xf32>
    %c0_2 = arith.constant 0 : index
    %c0_3 = arith.constant 0 : index
    %4 = vector.load %arg3[%c0_2, %c0_3] : memref<8x128xf32, #tpu.memory_space<vmem>>, vector<8x128xf32>
    %c0_4 = arith.constant 0 : index
    %c0_5 = arith.constant 0 : index
    %5 = vector.load %arg4[%c0_4, %c0_5] : memref<8x1xf32, #tpu.memory_space<vmem>>, vector<8x1xf32>
    %cst = arith.constant dense<0xFF800000> : vector<8xf32>
    %6 = vector.multi_reduction <maximumf>, %3, %cst [1] : vector<8x128xf32> to vector<8xf32>
    %7 = vector.shape_cast %6 : vector<8xf32> to vector<8x1xf32>
    %8 = vector.broadcast %7 : vector<8x1xf32> to vector<8x128xf32>
    %9 = arith.subf %3, %8 : vector<8x128xf32>
    %10 = math.exp %9 : vector<8x128xf32>
    %cst_6 = arith.constant 1.000000e+00 : f32
    %11 = vector.broadcast %cst_6 : f32 to vector<128x1xf32>
    %cst_7 = arith.constant dense<0.000000e+00> : vector<8x1xf32>
    %12 = tpu.matmul %10, %11, %cst_7 {dimension_numbers = #tpu.dot_dimension_numbers<[1], [0], [0], [1], [0, 0, 1, 1], [], []>} : vector<8x128xf32>, vector<128x1xf32>, vector<8x1xf32> -> vector<8x1xf32>
    %cst_8 = arith.constant dense<0.000000e+00> : vector<8x1xf32>
    %13 = tpu.matmul %4, %11, %cst_8 {dimension_numbers = #tpu.dot_dimension_numbers<[1], [0], [0], [1], [0, 0, 1, 1], [], []>} : vector<8x128xf32>, vector<128x1xf32>, vector<8x1xf32> -> vector<8x1xf32>
    %14 = arith.mulf %4, %9 : vector<8x128xf32>
    %cst_9 = arith.constant dense<0.000000e+00> : vector<8x1xf32>
    %15 = tpu.matmul %14, %11, %cst_9 {dimension_numbers = #tpu.dot_dimension_numbers<[1], [0], [0], [1], [0, 0, 1, 1], [], []>} : vector<8x128xf32>, vector<128x1xf32>, vector<8x1xf32> -> vector<8x1xf32>
    %16 = math.log %12 : vector<8x1xf32>
    %17 = arith.mulf %13, %16 : vector<8x1xf32>
    %18 = arith.subf %17, %15 : vector<8x1xf32>
    %c0_10 = arith.constant 0 : index
    %c0_11 = arith.constant 0 : index
    %19 = vector.load %arg7[%c0_10, %c0_11] : memref<8x1xf32, #tpu.memory_space<vmem>>, vector<8x1xf32>
    %20 = arith.mulf %18, %5 : vector<8x1xf32>
    %21 = arith.addf %19, %20 : vector<8x1xf32>
    %c0_12 = arith.constant 0 : index
    %c0_13 = arith.constant 0 : index
    %22 = vector.load %arg7[%c0_12, %c0_13] : memref<8x1xf32, #tpu.memory_space<vmem>>, vector<8x1xf32>
    tpu.vector_store %arg7[%c0_12, %c0_13], %21 {strides = array<i32>} : memref<8x1xf32, #tpu.memory_space<vmem>>, vector<8x1xf32>,
    %c0_14 = arith.constant 0 : index
    %c0_15 = arith.constant 0 : index
    %23 = vector.load %arg8[%c0_14, %c0_15] : memref<8x1xf32, #tpu.memory_space<vmem>>, vector<8x1xf32>
    %24 = arith.addf %23, %5 : vector<8x1xf32>
    %c0_16 = arith.constant 0 : index
    %c0_17 = arith.constant 0 : index
    %25 = vector.load %arg8[%c0_16, %c0_17] : memref<8x1xf32, #tpu.memory_space<vmem>>, vector<8x1xf32>
    tpu.vector_store %arg8[%c0_16, %c0_17], %24 {strides = array<i32>} : memref<8x1xf32, #tpu.memory_space<vmem>>, vector<8x1xf32>,
    %c0_i32_18 = arith.constant 0 : i32
    %26 = arith.cmpi eq, %arg1, %c0_i32_18 : i32
    %27 = arith.extui %26 : i1 to i32
    %c0_i32_19 = arith.constant 0 : i32
    %28 = arith.cmpi ne, %27, %c0_i32_19 : i32
    scf.if %28 {
      %cst_20 = arith.constant 0.000000e+00 : f32
      %29 = vector.broadcast %cst_20 : f32 to vector<8x128xf32>
      %c0_21 = arith.constant 0 : index
      %c0_22 = arith.constant 0 : index
      %30 = vector.load %arg7[%c0_21, %c0_22] : memref<8x1xf32, #tpu.memory_space<vmem>>, vector<8x1xf32>
      %31 = vector.shape_cast %30 : vector<8x1xf32> to vector<1x8x1xf32>
      %cst_23 = arith.constant dense<0.000000e+00> : vector<1xf32>
      %32 = vector.multi_reduction <add>, %31, %cst_23 [1, 2] : vector<1x8x1xf32> to vector<1xf32>
      %33 = vector.shape_cast %32 : vector<1xf32> to vector<1x1x1xf32>
      %34 = vector.extract %33[0, 0, 0] : f32 from vector<1x1x1xf32>
      %35 = vector.broadcast %34 : f32 to vector<8x128xf32>
      %36 = arith.addf %29, %35 : vector<8x128xf32>
      %c0_24 = arith.constant 0 : index
      %c0_25 = arith.constant 0 : index
      %37 = vector.load %arg5[%c0_24, %c0_25] : memref<8x128xf32, #tpu.memory_space<vmem>>, vector<8x128xf32>
      tpu.vector_store %arg5[%c0_24, %c0_25], %36 {strides = array<i32>} : memref<8x128xf32, #tpu.memory_space<vmem>>, vector<8x128xf32>,
      %cst_26 = arith.constant 0.000000e+00 : f32
      %38 = vector.broadcast %cst_26 : f32 to vector<8x128xf32>
      %c0_27 = arith.constant 0 : index
      %c0_28 = arith.constant 0 : index
      %39 = vector.load %arg8[%c0_27, %c0_28] : memref<8x1xf32, #tpu.memory_space<vmem>>, vector<8x1xf32>
      %40 = vector.shape_cast %39 : vector<8x1xf32> to vector<1x8x1xf32>
      %cst_29 = arith.constant dense<0.000000e+00> : vector<1xf32>
      %41 = vector.multi_reduction <add>, %40, %cst_29 [1, 2] : vector<1x8x1xf32> to vector<1xf32>
      %42 = vector.shape_cast %41 : vector<1xf32> to vector<1x1x1xf32>
      %43 = vector.extract %42[0, 0, 0] : f32 from vector<1x1x1xf32>
      %44 = vector.broadcast %43 : f32 to vector<8x128xf32>
      %45 = arith.addf %38, %44 : vector<8x128xf32>
      %c0_30 = arith.constant 0 : index
      %c0_31 = arith.constant 0 : index
      %46 = vector.load %arg6[%c0_30, %c0_31] : memref<8x128xf32, #tpu.memory_space<vmem>>, vector<8x128xf32>
      tpu.vector_store %arg6[%c0_30, %c0_31], %45 {strides = array<i32>} : memref<8x128xf32, #tpu.memory_space<vmem>>, vector<8x128xf32>,
    } else {
    }
    return
  }
  func.func @transform_0(%arg0: i32, %arg1: i32) -> (i32, i32) {
    %c1_i32 = arith.constant 1 : i32
    %0 = arith.muli %arg0, %c1_i32 : i32
    %1 = arith.addi %0, %arg1 : i32
    %c0_i32 = arith.constant 0 : i32
    %c0_i32_0 = arith.constant 0 : i32
    return %1, %c0_i32 : i32, i32
  }
  func.func @transform_1(%arg0: i32, %arg1: i32) -> (i32, i32) {
    %c1_i32 = arith.constant 1 : i32
    %0 = arith.muli %arg0, %c1_i32 : i32
    %1 = arith.addi %0, %arg1 : i32
    %c0_i32 = arith.constant 0 : i32
    %c0_i32_0 = arith.constant 0 : i32
    return %1, %c0_i32 : i32, i32
  }
  func.func @transform_2(%arg0: i32, %arg1: i32) -> (i32, i32) {
    %c1_i32 = arith.constant 1 : i32
    %0 = arith.muli %arg0, %c1_i32 : i32
    %1 = arith.addi %0, %arg1 : i32
    %c0_i32 = arith.constant 0 : i32
    %c0_i32_0 = arith.constant 0 : i32
    return %1, %c0_i32 : i32, i32
  }
  func.func @transform_3(%arg0: i32, %arg1: i32) -> (i32, i32) {
    %c0_i32 = arith.constant 0 : i32
    %c0_i32_0 = arith.constant 0 : i32
    return %arg0, %c0_i32 : i32, i32
  }
  func.func @transform_4(%arg0: i32, %arg1: i32) -> (i32, i32) {
    %c0_i32 = arith.constant 0 : i32
    %c0_i32_0 = arith.constant 0 : i32
    return %arg0, %c0_i32 : i32, i32
  }
}

</mosaic_0001>

<llo_original>
// kernel: tpu_custom_call.1
$region0: #{tpu_custom_call.1}
  #allocation0 [shape = 'u32[]', space=smem, size = 0x4, offset = 0x4, fixed_abs, tag = 'smem constant byte address 0x4 - core index']
  #allocation1 [shape = 'u32[144,128]{1,0:T(1,128)}', space=vmem, size = 0x12000, scoped, tag = 'internal scratch']
  #allocation2 [shape = 'f32[8,1]{1,0:T(8,128)}', space=vmem, size = 0x1000, scoped, tag = 'scratch operand']
  #allocation3 [shape = 'f32[8,1]{1,0:T(8,128)}', space=vmem, size = 0x1000, scoped, tag = 'scratch operand']
  %s0 = inlined_call_operand.vmem [shape: f32[16,128], index: 0, kind: input, shape index: {}]
  %s1 = inlined_call_operand.hbm [shape: f32[16,128], index: 1, kind: input, shape index: {}]
  %s2 = inlined_call_operand.vmem [shape: f32[16,1], index: 2, kind: input, shape index: {}]
  %s3 = inlined_call_operand.hbm [shape: f32[16,128], index: 3, kind: output, shape index: {0}]
  %s4 = inlined_call_operand.hbm [shape: f32[16,128], index: 4, kind: output, shape index: {1}]
  %5 = xla_tuple %s3, %s4
  %s6 = sld [smem:[#allocation0]]
  $region65: #{tpu_custom_call.1} parent=0
    _
  %s8 = ssub.s32 1, %s6
  %s9 = scalar_select 0, %s8, %s6
  $region1: #{tpu_custom_call.1} parent=0
    #allocation4 [shape = 'u8[8192]{0}', space=vmem, size = 0x2000, scoped, tag = 'input window, operand 1']
    #allocation5 [shape = 's32[2]{0}', space=sflag, size = 0x8, scoped, tag = 'scoped memory for tpu_custom_call.1']
    #allocation6 [shape = 's32[2]{0}', space=sflag, size = 0x8, scoped, tag = 'scoped memory for tpu_custom_call.1']
    #allocation7 [shape = 'u8[8192]{0}', space=vmem, size = 0x2000, scoped, tag = 'output window, operand 0']
    #allocation8 [shape = 'u8[8192]{0}', space=vmem, size = 0x2000, scoped, tag = 'output window, operand 1']
    #allocation9 [shape = 's32[2]{0}', space=sflag, size = 0x8, scoped, tag = 'scoped memory for tpu_custom_call.1']
    %10 = vsyncpa [#allocation5], 0
    %s11 = scalar_lea.sflag [#allocation5], 1
    %12 = vsyncpa %s11, 0
    %13 = vsyncpa [#allocation6], 0
    %s14 = scalar_lea.sflag [#allocation6], 1
    %15 = vsyncpa %s14, 0
    %16 = vsyncpa [#allocation9], 0
    %s17 = scalar_lea.sflag [#allocation9], 1
    %18 = vsyncpa %s17, 0
    loop: start=0, step=1, limit=4
    $region2: #{tpu_custom_call.1} parent=1 // loop_pre_header
      _
    $region3: #{tpu_custom_call.1} parent=1 // loop_header
      %s20 = sphi 0, %s24
      %p21 = scmp.ge.s32.totalorder %s20, 4
      %s27 = sphi 0, %s39
      %s28 = sphi 0, %s35
      %s29 = sphi 0, %s27
      %s30 = sphi 0, %s28
      %s31 = sphi 0, %s29
      %s32 = sphi 0, %s30
      %s44 = sphi 0, %s46
      %s47 = sphi 0, %s44
      %s48 = sphi 0, %s47
      %s64 = sphi 0, %s48
      %s72 = sphi 0, %s74
      %s75 = sphi 0, %s72
      %s76 = sphi 0, %s75
      %s92 = sphi 0, %s76
      %s100 = sphi 0, %s102
      %s103 = sphi 0, %s100
      %s104 = sphi 0, %s103
      %s120 = sphi 0, %s104
      %s126 = sphi 0, %s128
      %s129 = sphi 0, %s126
      %s130 = sphi 0, %s129
      %s146 = sphi 0, %s130
      %s152 = sphi 0, %s154
      %s155 = sphi 0, %s152
      %s156 = sphi 0, %s155
      %s172 = sphi 0, %s156
    $region4: #{tpu_custom_call.1} parent=1 // loop_header_branch
      %23 = sbr.rel (%p21) target = $region8
    $region5: #{tpu_custom_call.1} parent=1 // loop_body
      %s25 = ssub.s32 %s20, 1
      %s26 = ssub.s32 %s20, 2
      %s33 = sadd.s32 1, %s28
      %p34 = scmp.ge.s32.totalorder %s33, 1
      %s35 = scalar_select %p34, 0, %s33
      %s36 = sadd.s32 1, %s27
      %s37 = scalar_select %p34, %s36, %s27
      %p38 = scmp.ge.s32.totalorder %s37, 2
      %s39 = scalar_select %p38, 0, %s37
      %s40 = sadd.s32 %s27, %s28
      %s41 = sadd.s32 %s39, %s35
      %s42 = ssub.s32 %s40, %s41
      %p43 = scmp.eq.s32.totalorder %s42, 0
      %s45 = sadd.s32 %s44, 1
      %s46 = scalar_select %p43, %s44, %s45
      %p49 = pneg %p43
      %p50 = scmp.eq.s32.totalorder %s20, 1
      %p51 = por %p49, %p50
      %p52 = scmp.ne.s32.totalorder %s44, %s47
      %p53 = scmp.eq.s32.totalorder %s20, 0
      %p54 = por %p52, %p53
      %p55 = scmp.ne.s32.totalorder %s44, %s47
      %p56 = scmp.eq.s32.totalorder %s25, 1
      %p57 = por %p55, %p56
      %p58 = scmp.ne.s32.totalorder %s47, %s48
      %p59 = scmp.eq.s32.totalorder %s25, 0
      %p60 = por %p58, %p59
      %p61 = scmp.ne.s32.totalorder %s47, %s48
      %p62 = scmp.eq.s32.totalorder %s26, 1
      %p63 = por %p61, %p62
      %p65 = scmp.ne.s32.totalorder %s48, %s64
      %p66 = scmp.eq.s32.totalorder %s26, 0
      %p67 = por %p65, %p66
      %s68 = sadd.s32 %s27, %s28
      %s69 = sadd.s32 %s39, %s35
      %s70 = ssub.s32 %s68, %s69
      %p71 = scmp.eq.s32.totalorder %s70, 0
      %s73 = sadd.s32 %s72, 1
      %s74 = scalar_select %p71, %s72, %s73
      %p77 = pneg %p71
      %p78 = scmp.eq.s32.totalorder %s20, 1
      %p79 = por %p77, %p78
      %p80 = scmp.ne.s32.totalorder %s72, %s75
      %p81 = scmp.eq.s32.totalorder %s20, 0
      %p82 = por %p80, %p81
      %p83 = scmp.ne.s32.totalorder %s72, %s75
      %p84 = scmp.eq.s32.totalorder %s25, 1
      %p85 = por %p83, %p84
      %p86 = scmp.ne.s32.totalorder %s75, %s76
      %p87 = scmp.eq.s32.totalorder %s25, 0
      %p88 = por %p86, %p87
      %p89 = scmp.ne.s32.totalorder %s75, %s76
      %p90 = scmp.eq.s32.totalorder %s26, 1
      %p91 = por %p89, %p90
      %p93 = scmp.ne.s32.totalorder %s76, %s92
      %p94 = scmp.eq.s32.totalorder %s26, 0
      %p95 = por %p93, %p94
      %s96 = sadd.s32 %s27, %s28
      %s97 = sadd.s32 %s39, %s35
      %s98 = ssub.s32 %s96, %s97
      %p99 = scmp.eq.s32.totalorder %s98, 0
      %s101 = sadd.s32 %s100, 1
      %s102 = scalar_select %p99, %s100, %s101
      %p105 = pneg %p99
      %p106 = scmp.eq.s32.totalorder %s20, 1
      %p107 = por %p105, %p106
      %p108 = scmp.ne.s32.totalorder %s100, %s103
      %p109 = scmp.eq.s32.totalorder %s20, 0
      %p110 = por %p108, %p109
      %p111 = scmp.ne.s32.totalorder %s100, %s103
      %p112 = scmp.eq.s32.totalorder %s25, 1
      %p113 = por %p111, %p112
      %p114 = scmp.ne.s32.totalorder %s103, %s104
      %p115 = scmp.eq.s32.totalorder %s25, 0
      %p116 = por %p114, %p115
      %p117 = scmp.ne.s32.totalorder %s103, %s104
      %p118 = scmp.eq.s32.totalorder %s26, 1
      %p119 = por %p117, %p118
      %p121 = scmp.ne.s32.totalorder %s104, %s120
      %p122 = scmp.eq.s32.totalorder %s26, 0
      %p123 = por %p121, %p122
      %s124 = ssub.s32 %s27, %s39
      %p125 = scmp.eq.s32.totalorder %s124, 0
      %s127 = sadd.s32 %s126, 1
      %s128 = scalar_select %p125, %s126, %s127
      %p131 = pneg %p125
      %p132 = scmp.eq.s32.totalorder %s20, 1
      %p133 = por %p131, %p132
      %p134 = scmp.ne.s32.totalorder %s126, %s129
      %p135 = scmp.eq.s32.totalorder %s20, 0
      %p136 = por %p134, %p135
      %p137 = scmp.ne.s32.totalorder %s126, %s129
      %p138 = scmp.eq.s32.totalorder %s25, 1
      %p139 = por %p137, %p138
      %p140 = scmp.ne.s32.totalorder %s129, %s130
      %p141 = scmp.eq.s32.totalorder %s25, 0
      %p142 = por %p140, %p141
      %p143 = scmp.ne.s32.totalorder %s129, %s130
      %p144 = scmp.eq.s32.totalorder %s26, 1
      %p145 = por %p143, %p144
      %p147 = scmp.ne.s32.totalorder %s130, %s146
      %p148 = scmp.eq.s32.totalorder %s26, 0
      %p149 = por %p147, %p148
      %s150 = ssub.s32 %s27, %s39
      %p151 = scmp.eq.s32.totalorder %s150, 0
      %s153 = sadd.s32 %s152, 1
      %s154 = scalar_select %p151, %s152, %s153
      %p157 = pneg %p151
      %p158 = scmp.eq.s32.totalorder %s20, 1
      %p159 = por %p157, %p158
      %p160 = scmp.ne.s32.totalorder %s152, %s155
      %p161 = scmp.eq.s32.totalorder %s20, 0
      %p162 = por %p160, %p161
      %p163 = scmp.ne.s32.totalorder %s152, %s155
      %p164 = scmp.eq.s32.totalorder %s25, 1
      %p165 = por %p163, %p164
      %p166 = scmp.ne.s32.totalorder %s155, %s156
      %p167 = scmp.eq.s32.totalorder %s25, 0
      %p168 = por %p166, %p167
      %p169 = scmp.ne.s32.totalorder %s155, %s156
      %p170 = scmp.eq.s32.totalorder %s26, 1
      %p171 = por %p169, %p170
      %p173 = scmp.ne.s32.totalorder %s156, %s172
      %p174 = scmp.eq.s32.totalorder %s26, 0
      %p175 = por %p173, %p174
      %p176 = scmp.le.s32.totalorder 1, %s20
      %p177 = scmp.lt.s32.totalorder %s20, 3
      %p178 = pnand %p176, %p177
      %p179 = pneg %p178
      // Predicated region
      $region9: #{tpu_custom_call.1} parent=5 // pred_check
        _
      $region10: #{tpu_custom_call.1} parent=5 // pred_check_branch
        %181 = sbr.rel (%p178) target = $region12
      $region11: #{tpu_custom_call.1} parent=5 // pred_region
        %s182 = ssub.s32 %s20, 1
      $region12: #{tpu_custom_call.1} parent=5 // pred_fallthru
        _
      %p183 = scmp.lt.s32.totalorder %s20, 2
      // Predicated region
      $region13: #{tpu_custom_call.1} parent=5 // pred_check
        %p184 = pneg %p183
      $region14: #{tpu_custom_call.1} parent=5 // pred_check_branch
        %186 = sbr.rel (%p184) target = $region16
      $region15: #{tpu_custom_call.1} parent=5 // pred_region
        // Predicated region
        $region17: #{tpu_custom_call.1} parent=15 // pred_check
          %p187 = pneg %p54
        $region18: #{tpu_custom_call.1} parent=15 // pred_check_branch
          %189 = sbr.rel (%p187) target = $region20
        $region19: #{tpu_custom_call.1} parent=15 // pred_region
          %s190 = sadd.s32 %s27, %s28
          %p191 = scmp.lt.s32.totalorder %s190, 1
          %s192 = scalar_select %p191, %s190, 1
          %s193 = smul.addr %s192, 8
          %s194 = scalar_lea.vmem %s0, %s193
          %s195 = sadd.s32 %s27, %s28
        $region20: #{tpu_custom_call.1} parent=15 // pred_fallthru
          _
        // Predicated region
        $region21: #{tpu_custom_call.1} parent=15 // pred_check
          %p196 = pneg %p82
        $region22: #{tpu_custom_call.1} parent=15 // pred_check_branch
          %198 = sbr.rel (%p196) target = $region24
        $region23: #{tpu_custom_call.1} parent=15 // pred_region
          %s199 = sand.u32 %s72, 1
          %s200 = scalar_lea.sflag [#allocation5], %s199
          %s201 = sand.u32 %s72, 1
          %s202 = smul.addr %s201, 8
          %s203 = scalar_lea.vmem [#allocation4], %s202
          %s204 = sadd.s32 %s27, %s28
          %s206 = ssub.s32 128, 128
          %207 = vsyncadd %s200, %s206
          %s208 = smul.addr %s204, 128
          %s209 = scalar_lea.hbm %s1, %s208
          %s211 = sshll.u32 %s203, 4
          %s212 = int_to_ptr.vmem [resolvable:$true] %s211
          %214 = dma.hbm_to_vmem [thread:$0]  %s209, 128, %s212, %s200
        $region24: #{tpu_custom_call.1} parent=15 // pred_fallthru
          _
        // Predicated region
        $region25: #{tpu_custom_call.1} parent=15 // pred_check
          %p215 = pneg %p110
        $region26: #{tpu_custom_call.1} parent=15 // pred_check_branch
          %217 = sbr.rel (%p215) target = $region28
        $region27: #{tpu_custom_call.1} parent=15 // pred_region
          %s218 = sadd.s32 %s27, %s28
          %p219 = scmp.lt.s32.totalorder %s218, 1
          %s220 = scalar_select %p219, %s218, 1
          %s221 = smul.addr %s220, 8
          %s222 = scalar_lea.vmem %s2, %s221
          %s223 = sadd.s32 %s27, %s28
        $region28: #{tpu_custom_call.1} parent=15 // pred_fallthru
          _
      $region16: #{tpu_custom_call.1} parent=5 // pred_fallthru
        _
      %p224 = scmp.le.s32.totalorder 1, %s20
      %p225 = scmp.lt.s32.totalorder %s20, 3
      %p226 = pnand %p224, %p225
      %p227 = pneg %p226
      // Predicated region
      $region29: #{tpu_custom_call.1} parent=5 // pred_check
        _
      $region30: #{tpu_custom_call.1} parent=5 // pred_check_branch
        %229 = sbr.rel (%p226) target = $region32
      $region31: #{tpu_custom_call.1} parent=5 // pred_region
        %s230 = ssub.s32 %s20, 1
        %s231 = sand.u32 %s75, 1
        %s232 = scalar_lea.sflag [#allocation5], %s231
        %s233 = sand.u32 %s75, 1
        %s234 = smul.addr %s233, 8
        %s235 = scalar_lea.vmem [#allocation4], %s234
        // Predicated region
        $region33: #{tpu_custom_call.1} parent=31 // pred_check
          %p236 = pneg %p88
        $region34: #{tpu_custom_call.1} parent=31 // pred_check_branch
          %238 = sbr.rel (%p236) target = $region36
        $region35: #{tpu_custom_call.1} parent=31 // pred_region
          %239 = dma.done %s232, 128
        $region36: #{tpu_custom_call.1} parent=31 // pred_fallthru
          _
        %s240 = sadd.s32 %s29, %s30
        %p241 = scmp.lt.s32.totalorder %s240, 1
        %s242 = scalar_select %p241, %s240, 1
        %s243 = smul.addr %s242, 8
        %s244 = scalar_lea.vmem %s0, %s243
        %p245 = pneg %p60
        %p246 = pneg %p57
        %s247 = sand.u32 %s75, 1
        %s248 = scalar_lea.sflag [#allocation5], %s247
        %s249 = sand.u32 %s75, 1
        %s250 = smul.addr %s249, 8
        %s251 = scalar_lea.vmem [#allocation4], %s250
        %p252 = pneg %p88
        %p253 = pneg %p85
        %s254 = sadd.s32 %s29, %s30
        %p255 = scmp.lt.s32.totalorder %s254, 1
        %s256 = scalar_select %p255, %s254, 1
        %s257 = smul.addr %s256, 8
        %s258 = scalar_lea.vmem %s2, %s257
        %p259 = pneg %p116
        %p260 = pneg %p113
        %p261 = pneg %p142
        %p262 = pneg %p139
        %s263 = sand.u32 %s129, 1
        %s264 = scalar_lea.sflag [#allocation6], %s263
        %s265 = sand.u32 %s129, 1
        %s266 = smul.addr %s265, 8
        %s267 = scalar_lea.vmem [#allocation7], %s266
        %p268 = pneg %p168
        %p269 = pneg %p165
        %s270 = sand.u32 %s155, 1
        %s271 = scalar_lea.sflag [#allocation9], %s270
        %s272 = sand.u32 %s155, 1
        %s273 = smul.addr %s272, 8
        %s274 = scalar_lea.vmem [#allocation8], %s273
        %s275 = sadd.s32 %s29, %s30
        %p276 = scmp.lt.s32.totalorder %s275, 1
        %s277 = scalar_select %p276, %s275, 1
        %s278 = smul.addr %s277, 8
        %s279 = scalar_lea.vmem %s0, %s278
        %s280 = sadd.s32 %s29, %s30
        %s281 = sadd.s32 %s29, %s30
        %s282 = sadd.s32 %s29, %s30
        %p283 = scmp.lt.s32.totalorder %s282, 1
        %s284 = scalar_select %p283, %s282, 1
        %s285 = smul.addr %s284, 8
        %s286 = scalar_lea.vmem %s2, %s285
        %s287 = sadd.s32 %s29, %s30
        %p288 = scmp.eq.s32.totalorder %s30, 0
        // Predicated region
        $region37: #{tpu_custom_call.1} parent=31 // pred_check
          %p289 = pneg %p288
        $region38: #{tpu_custom_call.1} parent=31 // pred_check_branch
          %291 = sbr.rel (%p289) target = $region40
        $region39: #{tpu_custom_call.1} parent=31 // pred_region
          %vm292 = vcmask 7168
          %293 = vst.msk [vmem:[#allocation2] sm:$0xff] %vm292, 0.0
          %294 = vst.msk [vmem:[#allocation3] sm:$0xff] %vm292, 0.0
        $region40: #{tpu_custom_call.1} parent=31 // pred_fallthru
          _
        %v295 = vld [vmem:[%s279] sm:$0xff]
        %v296 = vld [vmem:[%s235] sm:$0xff]
        %v297 = vld [vmem:[%s286] sm:$0xff]
        %298 = vmax.xlane.f32.xlu0 %v295
        %v299 = vpop.xlane.xlu0 %298
        %v300 = vsub.f32 %v295, %v299
        %v301 = vmul.f32 %v300, 1.442695
        %v302 = vpow.pop %v301
        %303 = vmatprep.subr.mxu0 0.0
        %304 = vmatpush1.msra.mxu0 1.0
        %305 = vmatprep.subr.mxu0 0.0
        %306 = vmatpush1.msra.mxu0 1.0
        %307 = vmatprep.subr.mxu0 0.0
        %308 = vmatpush1.msra.mxu0 1.0
        %309 = vmatprep.subr.mxu0 0.0
        %310 = vmatpush1.msra.mxu0 1.0
        %311 = vmatprep.subr.mxu0 0.0
        %312 = vmatpush1.msra.mxu0 1.0
        %313 = vmatprep.subr.mxu0 0.0
        %314 = vmatpush1.msra.mxu0 1.0
        %315 = vmatprep.subr.mxu0 0.0
        %316 = vmatpush1.msra.mxu0 1.0
        %317 = vmatprep.subr.mxu0 0.0
        %318 = vmatpush1.msra.mxu0 1.0
        %319 = vmatprep.subr.mxu0 0.0
        %320 = vmatpush1.msra.mxu0 1.0
        %321 = vmatprep.subr.mxu0 0.0
        %322 = vmatpush1.msra.mxu0 1.0
        %323 = vmatprep.subr.mxu0 0.0
        %324 = vmatpush1.msra.mxu0 1.0
        %325 = vmatprep.subr.mxu0 0.0
        %326 = vmatpush1.msra.mxu0 1.0
        %327 = vmatprep.subr.mxu0 0.0
        %328 = vmatpush1.msra.mxu0 1.0
        %329 = vmatprep.subr.mxu0 0.0
        %330 = vmatpush1.msra.mxu0 1.0
        %331 = vmatprep.subr.mxu0 0.0
        %332 = vmatpush1.msra.mxu0 1.0
        %333 = vmatprep.subr.mxu0 0.0
        %334 = vmatpush1.msra.mxu0 1.0
        %335 = vmatprep.subr.mxu0 0.0
        %336 = vmatpush1.msra.mxu0 0.0
        %337 = vmatprep.subr.mxu0 0.0
        %338 = vmatpush1.msra.mxu0 0.0
        %339 = vmatprep.subr.mxu0 0.0
        %340 = vmatpush1.msra.mxu0 0.0
        %341 = vmatprep.subr.mxu0 0.0
        %342 = vmatpush1.msra.mxu0 0.0
        %343 = vmatprep.subr.mxu0 0.0
        %344 = vmatpush1.msra.mxu0 0.0
        %345 = vmatprep.subr.mxu0 0.0
        %346 = vmatpush1.msra.mxu0 0.0
        %347 = vmatprep.subr.mxu0 0.0
        %348 = vmatpush1.msra.mxu0 0.0
        %349 = vmatprep.subr.mxu0 0.0
        %350 = vmatpush1.msra.mxu0 0.0
        %351 = vmatprep.subr.mxu0 0.0
        %352 = vmatpush1.msra.mxu0 0.0
        %353 = vmatprep.subr.mxu0 0.0
        %354 = vmatpush1.msra.mxu0 0.0
        %355 = vmatprep.subr.mxu0 0.0
        %356 = vmatpush1.msra.mxu0 0.0
        %357 = vmatprep.subr.mxu0 0.0
        %358 = vmatpush1.msra.mxu0 0.0
        %359 = vmatprep.subr.mxu0 0.0
        %360 = vmatpush1.msra.mxu0 0.0
        %361 = vmatprep.subr.mxu0 0.0
        %362 = vmatpush1.msra.mxu0 0.0
        %363 = vmatprep.subr.mxu0 0.0
        %364 = vmatpush1.msra.mxu0 0.0
        %365 = vmatprep.subr.mxu0 0.0
        %366 = vmatpush1.msra.mxu0 0.0
        %367 = vmatprep.mubr.f32.mxu0 0.0
        %368 = vmatmul.mubr.f32.gmra.mrb[0].mxu0 %v302
        %v369 = vpop.f32.mrb[0].mxu0
        %v370 = vadd.f32 0.0, %v369
        %v371 = vpop.f32.mrb[0].mxu0
        %372 = vdwg.mxu0
        %373 = vmatprep.subr.mxu0 0.0
        %374 = vmatpush1.msra.mxu0 1.0
        %375 = vmatprep.subr.mxu0 0.0
        %376 = vmatpush1.msra.mxu0 1.0
        %377 = vmatprep.subr.mxu0 0.0
        %378 = vmatpush1.msra.mxu0 1.0
        %379 = vmatprep.subr.mxu0 0.0
        %380 = vmatpush1.msra.mxu0 1.0
        %381 = vmatprep.subr.mxu0 0.0
        %382 = vmatpush1.msra.mxu0 1.0
        %383 = vmatprep.subr.mxu0 0.0
        %384 = vmatpush1.msra.mxu0 1.0
        %385 = vmatprep.subr.mxu0 0.0
        %386 = vmatpush1.msra.mxu0 1.0
        %387 = vmatprep.subr.mxu0 0.0
        %388 = vmatpush1.msra.mxu0 1.0
        %389 = vmatprep.subr.mxu0 0.0
        %390 = vmatpush1.msra.mxu0 1.0
        %391 = vmatprep.subr.mxu0 0.0
        %392 = vmatpush1.msra.mxu0 1.0
        %393 = vmatprep.subr.mxu0 0.0
        %394 = vmatpush1.msra.mxu0 1.0
        %395 = vmatprep.subr.mxu0 0.0
        %396 = vmatpush1.msra.mxu0 1.0
        %397 = vmatprep.subr.mxu0 0.0
        %398 = vmatpush1.msra.mxu0 1.0
        %399 = vmatprep.subr.mxu0 0.0
        %400 = vmatpush1.msra.mxu0 1.0
        %401 = vmatprep.subr.mxu0 0.0
        %402 = vmatpush1.msra.mxu0 1.0
        %403 = vmatprep.subr.mxu0 0.0
        %404 = vmatpush1.msra.mxu0 1.0
        %405 = vmatprep.subr.mxu0 0.0
        %406 = vmatpush1.msra.mxu0 0.0
        %407 = vmatprep.subr.mxu0 0.0
        %408 = vmatpush1.msra.mxu0 0.0
        %409 = vmatprep.subr.mxu0 0.0
        %410 = vmatpush1.msra.mxu0 0.0
        %411 = vmatprep.subr.mxu0 0.0
        %412 = vmatpush1.msra.mxu0 0.0
        %413 = vmatprep.subr.mxu0 0.0
        %414 = vmatpush1.msra.mxu0 0.0
        %415 = vmatprep.subr.mxu0 0.0
        %416 = vmatpush1.msra.mxu0 0.0
        %417 = vmatprep.subr.mxu0 0.0
        %418 = vmatpush1.msra.mxu0 0.0
        %419 = vmatprep.subr.mxu0 0.0
        %420 = vmatpush1.msra.mxu0 0.0
        %421 = vmatprep.subr.mxu0 0.0
        %422 = vmatpush1.msra.mxu0 0.0
        %423 = vmatprep.subr.mxu0 0.0
        %424 = vmatpush1.msra.mxu0 0.0
        %425 = vmatprep.subr.mxu0 0.0
        %426 = vmatpush1.msra.mxu0 0.0
        %427 = vmatprep.subr.mxu0 0.0
        %428 = vmatpush1.msra.mxu0 0.0
        %429 = vmatprep.subr.mxu0 0.0
        %430 = vmatpush1.msra.mxu0 0.0
        %431 = vmatprep.subr.mxu0 0.0
        %432 = vmatpush1.msra.mxu0 0.0
        %433 = vmatprep.subr.mxu0 0.0
        %434 = vmatpush1.msra.mxu0 0.0
        %435 = vmatprep.subr.mxu0 0.0
        %436 = vmatpush1.msra.mxu0 0.0
        %437 = vmatprep.mubr.f32.mxu0 0.0
        %438 = vmatmul.mubr.f32.gmra.mrb[0].mxu0 %v296
        %v439 = vpop.f32.mrb[0].mxu0
        %v440 = vadd.f32 0.0, %v439
        %v441 = vpop.f32.mrb[0].mxu0
        %442 = vdwg.mxu0
        %v443 = vmul.f32 %v296, %v300
        %444 = vmatprep.subr.mxu0 0.0
        %445 = vmatpush1.msra.mxu0 1.0
        %446 = vmatprep.subr.mxu0 0.0
        %447 = vmatpush1.msra.mxu0 1.0
        %448 = vmatprep.subr.mxu0 0.0
        %449 = vmatpush1.msra.mxu0 1.0
        %450 = vmatprep.subr.mxu0 0.0
        %451 = vmatpush1.msra.mxu0 1.0
        %452 = vmatprep.subr.mxu0 0.0
        %453 = vmatpush1.msra.mxu0 1.0
        %454 = vmatprep.subr.mxu0 0.0
        %455 = vmatpush1.msra.mxu0 1.0
        %456 = vmatprep.subr.mxu0 0.0
        %457 = vmatpush1.msra.mxu0 1.0
        %458 = vmatprep.subr.mxu0 0.0
        %459 = vmatpush1.msra.mxu0 1.0
        %460 = vmatprep.subr.mxu0 0.0
        %461 = vmatpush1.msra.mxu0 1.0
        %462 = vmatprep.subr.mxu0 0.0
        %463 = vmatpush1.msra.mxu0 1.0
        %464 = vmatprep.subr.mxu0 0.0
        %465 = vmatpush1.msra.mxu0 1.0
        %466 = vmatprep.subr.mxu0 0.0
        %467 = vmatpush1.msra.mxu0 1.0
        %468 = vmatprep.subr.mxu0 0.0
        %469 = vmatpush1.msra.mxu0 1.0
        %470 = vmatprep.subr.mxu0 0.0
        %471 = vmatpush1.msra.mxu0 1.0
        %472 = vmatprep.subr.mxu0 0.0
        %473 = vmatpush1.msra.mxu0 1.0
        %474 = vmatprep.subr.mxu0 0.0
        %475 = vmatpush1.msra.mxu0 1.0
        %476 = vmatprep.subr.mxu0 0.0
        %477 = vmatpush1.msra.mxu0 0.0
        %478 = vmatprep.subr.mxu0 0.0
        %479 = vmatpush1.msra.mxu0 0.0
        %480 = vmatprep.subr.mxu0 0.0
        %481 = vmatpush1.msra.mxu0 0.0
        %482 = vmatprep.subr.mxu0 0.0
        %483 = vmatpush1.msra.mxu0 0.0
        %484 = vmatprep.subr.mxu0 0.0
        %485 = vmatpush1.msra.mxu0 0.0
        %486 = vmatprep.subr.mxu0 0.0
        %487 = vmatpush1.msra.mxu0 0.0
        %488 = vmatprep.subr.mxu0 0.0
        %489 = vmatpush1.msra.mxu0 0.0
        %490 = vmatprep.subr.mxu0 0.0
        %491 = vmatpush1.msra.mxu0 0.0
        %492 = vmatprep.subr.mxu0 0.0
        %493 = vmatpush1.msra.mxu0 0.0
        %494 = vmatprep.subr.mxu0 0.0
        %495 = vmatpush1.msra.mxu0 0.0
        %496 = vmatprep.subr.mxu0 0.0
        %497 = vmatpush1.msra.mxu0 0.0
        %498 = vmatprep.subr.mxu0 0.0
        %499 = vmatpush1.msra.mxu0 0.0
        %500 = vmatprep.subr.mxu0 0.0
        %501 = vmatpush1.msra.mxu0 0.0
        %502 = vmatprep.subr.mxu0 0.0
        %503 = vmatpush1.msra.mxu0 0.0
        %504 = vmatprep.subr.mxu0 0.0
        %505 = vmatpush1.msra.mxu0 0.0
        %506 = vmatprep.subr.mxu0 0.0
        %507 = vmatpush1.msra.mxu0 0.0
        %508 = vmatprep.mubr.f32.mxu0 0.0
        %509 = vmatmul.mubr.f32.gmra.mrb[0].mxu0 %v443
        %v510 = vpop.f32.mrb[0].mxu0
        %v511 = vadd.f32 0.0, %v510
        %v512 = vpop.f32.mrb[0].mxu0
        %513 = vdwg.mxu0
        %v514 = vlog2.pop %v370
        %v515 = vmul.f32 %v514, 0.6931472
        %v516 = vmul.f32 %v440, %v515
        %v517 = vsub.f32 %v516, %v511
        %v518 = vld [vmem:[#allocation2] sm:$0xff]
        %v519 = vmul.f32 %v517, %v297
        %v520 = vadd.f32 %v518, %v519
        %vm521 = vcmask 7168
        %522 = vst.msk [vmem:[#allocation2] sm:$0xff] %vm521, %v520
        %v523 = vld [vmem:[#allocation3] sm:$0xff]
        %v524 = vadd.f32 %v523, %v297
        %525 = vst.msk [vmem:[#allocation3] sm:$0xff] %vm521, %v524
        // Predicated region
        $region41: #{tpu_custom_call.1} parent=31 // pred_check
          %p526 = pneg %p288
        $region42: #{tpu_custom_call.1} parent=31 // pred_check_branch
          %528 = sbr.rel (%p526) target = $region44
        $region43: #{tpu_custom_call.1} parent=31 // pred_region
          %v529 = vld [vmem:[#allocation2] sm:$0xff]
          %v530 = vsel %vm521, %v529, 0.0
          %531 = vadd.xlane.f32.xlu0 %v530
          %v532 = vpop.xlane.xlu0 %531
          %v533 = vrot.slane %v532, 4
          %v534 = vadd.f32 %v532, %v533
          %v535 = vrot.slane %v534, 2
          %v536 = vadd.f32 %v534, %v535
          %v537 = vrot.slane %v536, 1
          %v538 = vadd.f32 %v536, %v537
          %s539 = vtos %v538
          %v540 = vstv %s539
          %v541 = vadd.f32 %v540, 0.0
          %542 = vst [vmem:[%s267] sm:$0xff] %v541
          %v543 = vld [vmem:[#allocation3] sm:$0xff]
          %v544 = vsel %vm521, %v543, 0.0
          %545 = vadd.xlane.f32.xlu0 %v544
          %v546 = vpop.xlane.xlu0 %545
          %v547 = vrot.slane %v546, 4
          %v548 = vadd.f32 %v546, %v547
          %v549 = vrot.slane %v548, 2
          %v550 = vadd.f32 %v548, %v549
          %v551 = vrot.slane %v550, 1
          %v552 = vadd.f32 %v550, %v551
          %s553 = vtos %v552
          %v554 = vstv %s553
          %v555 = vadd.f32 %v554, 0.0
          %556 = vst [vmem:[%s274] sm:$0xff] %v555
        $region44: #{tpu_custom_call.1} parent=31 // pred_fallthru
          _
        %s557 = sand.u32 %s129, 1
        %s558 = scalar_lea.sflag [#allocation6], %s557
        %s559 = sand.u32 %s129, 1
        %s560 = smul.addr %s559, 8
        %s561 = scalar_lea.vmem [#allocation7], %s560
        %s562 = sand.u32 %s155, 1
        %s563 = scalar_lea.sflag [#allocation9], %s562
        %s564 = sand.u32 %s155, 1
        %s565 = smul.addr %s564, 8
        %s566 = scalar_lea.vmem [#allocation8], %s565
        // Predicated region
        $region45: #{tpu_custom_call.1} parent=31 // pred_check
          %p567 = pneg %p139
        $region46: #{tpu_custom_call.1} parent=31 // pred_check_branch
          %569 = sbr.rel (%p567) target = $region48
        $region47: #{tpu_custom_call.1} parent=31 // pred_region
          %s571 = ssub.s32 128, 128
          %572 = vsyncadd %s558, %s571
          %s573 = smul.addr %s29, 128
          %s574 = scalar_lea.hbm %s3, %s573
          %s576 = sshll.u32 %s561, 4
          %s577 = int_to_ptr.vmem [resolvable:$true] %s576
          %579 = dma.vmem_to_hbm [thread:$0]  %s577, 128, %s574, %s558
        $region48: #{tpu_custom_call.1} parent=31 // pred_fallthru
          _
        // Predicated region
        $region49: #{tpu_custom_call.1} parent=31 // pred_check
          %p580 = pneg %p165
        $region50: #{tpu_custom_call.1} parent=31 // pred_check_branch
          %582 = sbr.rel (%p580) target = $region52
        $region51: #{tpu_custom_call.1} parent=31 // pred_region
          %s584 = ssub.s32 128, 128
          %585 = vsyncadd %s563, %s584
          %s586 = smul.addr %s29, 128
          %s587 = scalar_lea.hbm %s4, %s586
          %s589 = sshll.u32 %s566, 4
          %s590 = int_to_ptr.vmem [resolvable:$true] %s589
          %592 = dma.vmem_to_hbm [thread:$0]  %s590, 128, %s587, %s563
        $region52: #{tpu_custom_call.1} parent=31 // pred_fallthru
          _
      $region32: #{tpu_custom_call.1} parent=5 // pred_fallthru
        _
      %p593 = scmp.le.s32.totalorder 2, %s20
      // Predicated region
      $region53: #{tpu_custom_call.1} parent=5 // pred_check
        %p594 = pneg %p593
      $region54: #{tpu_custom_call.1} parent=5 // pred_check_branch
        %596 = sbr.rel (%p594) target = $region56
      $region55: #{tpu_custom_call.1} parent=5 // pred_region
        %s597 = ssub.s32 %s20, 2
        // Predicated region
        $region57: #{tpu_custom_call.1} parent=55 // pred_check
          %p598 = pneg %p145
        $region58: #{tpu_custom_call.1} parent=55 // pred_check_branch
          %600 = sbr.rel (%p598) target = $region60
        $region59: #{tpu_custom_call.1} parent=55 // pred_region
          %s601 = sand.u32 %s130, 1
          %s602 = scalar_lea.sflag [#allocation6], %s601
          %s603 = sand.u32 %s130, 1
          %s604 = smul.addr %s603, 8
          %s605 = scalar_lea.vmem [#allocation7], %s604
          %606 = dma.done %s602, 128
        $region60: #{tpu_custom_call.1} parent=55 // pred_fallthru
          _
        // Predicated region
        $region61: #{tpu_custom_call.1} parent=55 // pred_check
          %p607 = pneg %p171
        $region62: #{tpu_custom_call.1} parent=55 // pred_check_branch
          %609 = sbr.rel (%p607) target = $region64
        $region63: #{tpu_custom_call.1} parent=55 // pred_region
          %s610 = sand.u32 %s156, 1
          %s611 = scalar_lea.sflag [#allocation9], %s610
          %s612 = sand.u32 %s156, 1
          %s613 = smul.addr %s612, 8
          %s614 = scalar_lea.vmem [#allocation8], %s613
          %615 = dma.done %s611, 128
        $region64: #{tpu_custom_call.1} parent=55 // pred_fallthru
          _
      $region56: #{tpu_custom_call.1} parent=5 // pred_fallthru
        _
    $region6: #{tpu_custom_call.1} parent=1 // loop_footer
      %s24 = sadd.s32 1, %s20
    $region7: #{tpu_custom_call.1} parent=1 // loop_footer_branch
      %19 = sbr.rel target = $region3
    $region8: #{tpu_custom_call.1} parent=1 // loop_exit
      _
    %616 = vsyncpa [#allocation5], 1
    %s617 = scalar_lea.sflag [#allocation5], 1
    %618 = vsyncpa %s617, 1
    %619 = vsyncpa [#allocation6], 1
    %s620 = scalar_lea.sflag [#allocation6], 1
    %621 = vsyncpa %s620, 1
    %622 = vsyncpa [#allocation9], 1
    %s623 = scalar_lea.sflag [#allocation9], 1
    %624 = vsyncpa %s623, 1

</llo_original>
